<compile_context>
chip_gen: v7x
topology: tpu7x:2x2x1
jax: 0.10.0
libtpu: 0.0.40
codegen_flags: <defaults>
</compile_context>

<pallas_src>
import functools
import math

import jax
import jax.numpy as jnp
from jax.experimental import pallas as pl
from jax.experimental.pallas import tpu as pltpu


# --------------------------------------------------------------------------- #
# Kernel body
# --------------------------------------------------------------------------- #
def _gcn_fused_kernel(*refs, hop, alpha):
    """refs = (x_ref, w1_ref, b1_ref, ..., w_hop_ref, b_hop_ref, o_ref).

    x_ref : (tm, Fin)  bf16 tile of the flattened batch*node axis
    w_i   : (fin_i, H) bf16 (pre-transposed nn.Linear weight)
    b_i   : (1, H)     bf16
    o_ref : (tm, H)
    """
    x_ref = refs[0]
    o_ref = refs[1 + 2 * hop]

    h = x_ref[...]                                    # bf16
    for i in range(hop):
        w_ref = refs[1 + 2 * i]
        b_ref = refs[2 + 2 * i]
        # bf16 operands, f32 accumulation on the MXU.
        h = jnp.dot(h.astype(jnp.bfloat16), w_ref[...],
                    preferred_element_type=jnp.float32)
        h = h + b_ref[...].astype(jnp.float32)
        h = jnp.where(h > 0, h, alpha * h)            # LeakyReLU(alpha), f32
    o_ref[...] = h.astype(o_ref.dtype)


# --------------------------------------------------------------------------- #
# Generation-aware tiling
# --------------------------------------------------------------------------- #
_SUB = 16  # bf16 sublane packing: keep row tiles a multiple of 16


def _round_up(x, m):
    return ((x + m - 1) // m) * m


def _device_kind():
    try:
        return jax.devices()[0].device_kind.lower()
    except Exception:
        return ""


def _tpu_tiling_config():
    kind = _device_kind()
    if "v7" in kind:
        # 2 TensorCores, 64 MiB VMEM per TC.
        return dict(multi_tc=True, cap=512, vmem_budget=48 << 20)
    if "v5" in kind or "v6" in kind:
        # single TC, 128 MiB VMEM.
        return dict(multi_tc=False, cap=1024, vmem_budget=96 << 20)
    # Unknown generation: conservative cap, keep the compiler's default scoped VMEM.
    return dict(multi_tc=False, cap=512, vmem_budget=None)


def _lane_pad_bytes(rows, cols, itemsize):
    return rows * _round_up(cols, 128) * itemsize


def _select_row_tile(M, Fin, H, hop, out_itemsize):
    cfg = _tpu_tiling_config()
    sizing_budget = cfg["vmem_budget"] if cfg["vmem_budget"] is not None else (12 << 20)

    # Resident weights/biases, bf16, conservatively 2x for Pallas double buffering.
    w_bytes, fin = 0, Fin
    for _ in range(hop):
        w_bytes += 2 * (_lane_pad_bytes(_round_up(fin, _SUB), H, 2)
                        + _lane_pad_bytes(_SUB, H, 2))
        fin = H
    # Per-row streaming bytes: double-buffered x tile (bf16) + out tile.
    per_row = 2 * _lane_pad_bytes(1, Fin, 2) + 2 * _lane_pad_bytes(1, H, out_itemsize)
    tm_vmem = max(_SUB, ((sizing_budget - w_bytes) // max(per_row, 1)) // _SUB * _SUB)

    m_pad = _round_up(M, _SUB)
    tm = min(cfg["cap"], tm_vmem, m_pad)
    if cfg["multi_tc"] and m_pad >= 2 * _SUB:
        # v7x: make sure there are >=2 grid steps so both TensorCores get work.
        tm = min(tm, _round_up(pl.cdiv(m_pad, 2), _SUB))
    return max(_SUB, tm), cfg["vmem_budget"]


# --------------------------------------------------------------------------- #
# Wrapper
# --------------------------------------------------------------------------- #
def gcn_forward(params, h_c, adj=None, *, alpha=0.2, out_dtype=jnp.bfloat16):
    """GCN.forward.  `adj` is accepted for interface parity only: the original
    module row-normalizes it into a local that is never used afterwards, so it
    has zero effect on the output and we issue no compute/DMA for it."""
    del adj  # dead code in the original forward (see module docstring above)

    B, N, Fin = h_c.shape
    H = params[0]["w"].shape[1]
    hop = len(params)
    M = B * N
    out_itemsize = jnp.dtype(out_dtype).itemsize

    tm, vmem_budget = _select_row_tile(M, Fin, H, hop, out_itemsize)
    grid = (pl.cdiv(M, tm),)

    # Free row-major reshape: fold batch*node onto the MXU M dimension.
    x2d = h_c.reshape(M, Fin).astype(jnp.bfloat16)

    weight_args = []
    in_specs = [pl.BlockSpec((tm, Fin), lambda i: (i, 0))]
    fin, flops, w_stream_bytes = Fin, 0, 0
    for p in params:
        w = jnp.asarray(p["w"], jnp.bfloat16)              # (fin, H), pre-transposed
        b = jnp.asarray(p["b"], jnp.bfloat16).reshape(1, H)
        weight_args += [w, b]
        in_specs += [
            pl.BlockSpec((fin, H), lambda i: (0, 0)),      # VMEM-resident across grid
            pl.BlockSpec((1, H), lambda i: (0, 0)),
        ]
        flops += 2 * M * fin * H
        w_stream_bytes += (fin * H + H) * 2
        fin = H

    cost = pl.CostEstimate(
        flops=int(flops),
        transcendentals=0,
        bytes_accessed=int(M * Fin * 2 + M * H * out_itemsize + w_stream_bytes),
    )

    cp_kwargs = dict(dimension_semantics=("parallel",))
    if vmem_budget is not None:
        cp_kwargs["vmem_limit_bytes"] = vmem_budget

    kernel = functools.partial(_gcn_fused_kernel, hop=hop, alpha=alpha)
    out2d = pl.pallas_call(
        kernel,
        out_shape=jax.ShapeDtypeStruct((M, H), out_dtype),
        grid_spec=pltpu.PrefetchScalarGridSpec(
            num_scalar_prefetch=0,
            grid=grid,
            in_specs=in_specs,
            out_specs=pl.BlockSpec((tm, H), lambda i: (i, 0)),
        ),
        compiler_params=pltpu.CompilerParams(**cp_kwargs),
        cost_estimate=cost,
    )(x2d, *weight_args)
    return out2d.reshape(B, N, H)


def init_gcn_params(key, in_features, out_features, hop=2, dtype=jnp.bfloat16):
    """Kernel-layout params, built ONCE: w is (fan_in, out_features) (i.e. the
    nn.Linear weight already transposed) and b is (out_features,), both pre-cast
    to bf16; init matches nn.Linear's U(-1/sqrt(fan_in), 1/sqrt(fan_in))."""
    params = []
    fin = in_features
    for _ in range(hop):
        key, kw, kb = jax.random.split(key, 3)
        bound = 1.0 / math.sqrt(fin)
        params.append(dict(
            w=jax.random.uniform(kw, (fin, out_features), jnp.float32,
                                 -bound, bound).astype(dtype),
            b=jax.random.uniform(kb, (out_features,), jnp.float32,
                                 -bound, bound).astype(dtype),
        ))
        fin = out_features
    return params


# --------------------------- pure-JAX reference ------------------------------ #
def _ref_forward(params, h_c, adj=None, *, alpha=0.2, out_dtype=jnp.bfloat16):
    # adj row-normalization in the original forward is dead code -> ignored.
    del adj
    B, N, _ = h_c.shape
    h = h_c.reshape(B * N, -1).astype(jnp.bfloat16)
    H = params[0]["w"].shape[1]
    for p in params:
        h = jnp.dot(h.astype(jnp.bfloat16), jnp.asarray(p["w"], jnp.bfloat16),
                    preferred_element_type=jnp.float32)
        h = h + jnp.asarray(p["b"], jnp.bfloat16).astype(jnp.float32)
        h = jnp.where(h > 0, h, alpha * h)
    return h.astype(out_dtype).reshape(B, N, H)


if __name__ == "__main__":
    B, N, IN_FEAT, OUT_FEAT, HOP, ALPHA = 2, 16, 8, 32, 2, 0.2

    root = jax.random.PRNGKey(0)
    k_x, k_adj, k_p = jax.random.split(root, 3)

    h_c = jax.random.normal(k_x, (B, N, IN_FEAT), jnp.float32)
    # adj is part of the module's forward signature but never affects the output.
    adj = (jax.random.uniform(k_adj, (N, N)) < 0.3).astype(jnp.float32)

    params = init_gcn_params(k_p, IN_FEAT, OUT_FEAT, hop=HOP)

    fwd = jax.jit(functools.partial(gcn_forward, alpha=ALPHA))
    out = jax.block_until_ready(fwd(params, h_c, adj))

    ref = _ref_forward(params, h_c, adj, alpha=ALPHA)
    assert out.shape == (B, N, OUT_FEAT)
    assert jnp.allclose(out.astype(jnp.float32), ref.astype(jnp.float32),
                        atol=2e-2, rtol=2e-2), "mismatch vs reference"

    print("KERNEL_OK")
</pallas_src>

<mosaic_0001>
module attributes {stable_mosaic.version = 11 : i64} {
  func.func @_gcn_fused_kernel(%arg0: i32, %arg1: memref<32x8xbf16, #tpu.memory_space<vmem>>, %arg2: memref<8x32xbf16, #tpu.memory_space<vmem>>, %arg3: memref<1x32xbf16, #tpu.memory_space<vmem>>, %arg4: memref<32x32xbf16, #tpu.memory_space<vmem>>, %arg5: memref<1x32xbf16, #tpu.memory_space<vmem>>, %arg6: memref<32x32xbf16, #tpu.memory_space<vmem>>) attributes {dimension_semantics = [#tpu.dimension_semantics<parallel>], iteration_bounds = array<i64: 1>, scalar_prefetch = 0 : i64, scratch_operands = 0 : i64, tpu.core_type = #tpu.core_type<tc>, window_params = [{transform_indices = @transform_0, window_bounds = array<i64: 32, 8>}, {pipeline_mode = #tpu.pipeline_mode<synchronous>, transform_indices = @transform_1, window_bounds = array<i64: 8, 32>}, {pipeline_mode = #tpu.pipeline_mode<synchronous>, transform_indices = @transform_2, window_bounds = array<i64: 1, 32>}, {pipeline_mode = #tpu.pipeline_mode<synchronous>, transform_indices = @transform_3, window_bounds = array<i64: 32, 32>}, {pipeline_mode = #tpu.pipeline_mode<synchronous>, transform_indices = @transform_4, window_bounds = array<i64: 1, 32>}, {transform_indices = @transform_5, window_bounds = array<i64: 32, 32>}]} {
    %c0 = arith.constant 0 : index
    %c0_0 = arith.constant 0 : index
    %0 = vector.load %arg1[%c0, %c0_0] : memref<32x8xbf16, #tpu.memory_space<vmem>>, vector<32x8xbf16>
    %c0_1 = arith.constant 0 : index
    %c0_2 = arith.constant 0 : index
    %1 = vector.load %arg2[%c0_1, %c0_2] : memref<8x32xbf16, #tpu.memory_space<vmem>>, vector<8x32xbf16>
    %cst = arith.constant dense<0.000000e+00> : vector<32x32xf32>
    %2 = tpu.matmul %0, %1, %cst {dimension_numbers = #tpu.dot_dimension_numbers<[1], [0], [0], [1], [0, 0, 1, 1], [], []>} : vector<32x8xbf16>, vector<8x32xbf16>, vector<32x32xf32> -> vector<32x32xf32>
    %c0_3 = arith.constant 0 : index
    %c0_4 = arith.constant 0 : index
    %3 = vector.load %arg3[%c0_3, %c0_4] : memref<1x32xbf16, #tpu.memory_space<vmem>>, vector<1x32xbf16>
    %4 = arith.extf %3 : vector<1x32xbf16> to vector<1x32xf32>
    %5 = vector.broadcast %4 : vector<1x32xf32> to vector<32x32xf32>
    %6 = arith.addf %2, %5 : vector<32x32xf32>
    %cst_5 = arith.constant 0.000000e+00 : f32
    %7 = vector.broadcast %cst_5 : f32 to vector<32x32xf32>
    %8 = arith.cmpf ogt, %6, %7 : vector<32x32xf32>
    %cst_6 = arith.constant 2.000000e-01 : f32
    %9 = vector.broadcast %cst_6 : f32 to vector<32x32xf32>
    %10 = arith.mulf %9, %6 : vector<32x32xf32>
    %11 = arith.select %8, %6, %10 : vector<32x32xi1>, vector<32x32xf32>
    %12 = arith.truncf %11 : vector<32x32xf32> to vector<32x32xbf16>
    %c0_7 = arith.constant 0 : index
    %c0_8 = arith.constant 0 : index
    %13 = vector.load %arg4[%c0_7, %c0_8] : memref<32x32xbf16, #tpu.memory_space<vmem>>, vector<32x32xbf16>
    %cst_9 = arith.constant dense<0.000000e+00> : vector<32x32xf32>
    %14 = tpu.matmul %12, %13, %cst_9 {dimension_numbers = #tpu.dot_dimension_numbers<[1], [0], [0], [1], [0, 0, 1, 1], [], []>} : vector<32x32xbf16>, vector<32x32xbf16>, vector<32x32xf32> -> vector<32x32xf32>
    %c0_10 = arith.constant 0 : index
    %c0_11 = arith.constant 0 : index
    %15 = vector.load %arg5[%c0_10, %c0_11] : memref<1x32xbf16, #tpu.memory_space<vmem>>, vector<1x32xbf16>
    %16 = arith.extf %15 : vector<1x32xbf16> to vector<1x32xf32>
    %17 = vector.broadcast %16 : vector<1x32xf32> to vector<32x32xf32>
    %18 = arith.addf %14, %17 : vector<32x32xf32>
    %cst_12 = arith.constant 0.000000e+00 : f32
    %19 = vector.broadcast %cst_12 : f32 to vector<32x32xf32>
    %20 = arith.cmpf ogt, %18, %19 : vector<32x32xf32>
    %cst_13 = arith.constant 2.000000e-01 : f32
    %21 = vector.broadcast %cst_13 : f32 to vector<32x32xf32>
    %22 = arith.mulf %21, %18 : vector<32x32xf32>
    %23 = arith.select %20, %18, %22 : vector<32x32xi1>, vector<32x32xf32>
    %24 = arith.truncf %23 : vector<32x32xf32> to vector<32x32xbf16>
    %c0_14 = arith.constant 0 : index
    %c0_15 = arith.constant 0 : index
    %25 = vector.load %arg6[%c0_14, %c0_15] : memref<32x32xbf16, #tpu.memory_space<vmem>>, vector<32x32xbf16>
    tpu.vector_store %arg6[%c0_14, %c0_15], %24 {strides = array<i32>} : memref<32x32xbf16, #tpu.memory_space<vmem>>, vector<32x32xbf16>,
    return
  }
  func.func @transform_0(%arg0: i32) -> (i32, i32) {
    %c0_i32 = arith.constant 0 : i32
    %c0_i32_0 = arith.constant 0 : i32
    return %arg0, %c0_i32 : i32, i32
  }
  func.func @transform_1(%arg0: i32) -> (i32, i32) {
    %c0_i32 = arith.constant 0 : i32
    %c0_i32_0 = arith.constant 0 : i32
    %c0_i32_1 = arith.constant 0 : i32
    return %c0_i32, %c0_i32_0 : i32, i32
  }
  func.func @transform_2(%arg0: i32) -> (i32, i32) {
    %c0_i32 = arith.constant 0 : i32
    %c0_i32_0 = arith.constant 0 : i32
    %c0_i32_1 = arith.constant 0 : i32
    return %c0_i32, %c0_i32_0 : i32, i32
  }
  func.func @transform_3(%arg0: i32) -> (i32, i32) {
    %c0_i32 = arith.constant 0 : i32
    %c0_i32_0 = arith.constant 0 : i32
    %c0_i32_1 = arith.constant 0 : i32
    return %c0_i32, %c0_i32_0 : i32, i32
  }
  func.func @transform_4(%arg0: i32) -> (i32, i32) {
    %c0_i32 = arith.constant 0 : i32
    %c0_i32_0 = arith.constant 0 : i32
    %c0_i32_1 = arith.constant 0 : i32
    return %c0_i32, %c0_i32_0 : i32, i32
  }
  func.func @transform_5(%arg0: i32) -> (i32, i32) {
    %c0_i32 = arith.constant 0 : i32
    %c0_i32_0 = arith.constant 0 : i32
    return %arg0, %c0_i32 : i32, i32
  }
}

</mosaic_0001>

<llo_original>
// kernel: gcn_forward.1
$region0: #{gcn_forward.1}
  #allocation0 [shape = 'u32[]', space=smem, size = 0x4, offset = 0x4, fixed_abs, tag = 'smem constant byte address 0x4 - core index']
  #allocation1 [shape = 'u32[144,128]{1,0:T(1,128)}', space=vmem, size = 0x12000, scoped, tag = 'internal scratch']
  %s0 = inlined_call_operand.vmem [shape: bf16[32,8], index: 0, kind: input, shape index: {}]
  %s1 = inlined_call_operand.vmem [shape: bf16[8,32], index: 1, kind: input, shape index: {}]
  %s2 = inlined_call_operand.vmem [shape: bf16[1,32], index: 2, kind: input, shape index: {}]
  %s3 = inlined_call_operand.vmem [shape: bf16[32,32], index: 3, kind: input, shape index: {}]
  %s4 = inlined_call_operand.vmem [shape: bf16[1,32], index: 4, kind: input, shape index: {}]
  %s5 = inlined_call_operand.hbm [shape: bf16[32,32], index: 5, kind: output, shape index: {}]
  %s6 = sld [smem:[#allocation0]]
  $region30: #{gcn_forward.1} parent=0
    _
  %s8 = ssub.s32 1, %s6
  %s9 = scalar_select 0, %s8, %s6
  $region1: #{gcn_forward.1} parent=0
    #allocation2 [shape = 'u8[8192]{0}', space=vmem, size = 0x2000, scoped, tag = 'output window, operand 0, single buffered']
    #allocation3 [shape = 's32[1]{0}', space=sflag, size = 0x4, scoped, tag = 'scoped memory for gcn_forward.1']
    %10 = vsyncpa [#allocation3], 0
    // Predicated region
    $region2: #{gcn_forward.1} parent=1 // pred_check
      _
    $region3: #{gcn_forward.1} parent=1 // pred_check_branch
      %12 = sbr.rel (0) target = $region5
    $region4: #{gcn_forward.1} parent=1 // pred_region
      _
    $region5: #{gcn_forward.1} parent=1 // pred_fallthru
      _
    // Predicated region
    $region6: #{gcn_forward.1} parent=1 // pred_check
      _
    $region7: #{gcn_forward.1} parent=1 // pred_check_branch
      %14 = sbr.rel (0) target = $region9
    $region8: #{gcn_forward.1} parent=1 // pred_region
      _
    $region9: #{gcn_forward.1} parent=1 // pred_fallthru
      _
    // Predicated region
    $region10: #{gcn_forward.1} parent=1 // pred_check
      _
    $region11: #{gcn_forward.1} parent=1 // pred_check_branch
      %16 = sbr.rel (0) target = $region13
    $region12: #{gcn_forward.1} parent=1 // pred_region
      _
    $region13: #{gcn_forward.1} parent=1 // pred_fallthru
      _
    // Predicated region
    $region14: #{gcn_forward.1} parent=1 // pred_check
      _
    $region15: #{gcn_forward.1} parent=1 // pred_check_branch
      %18 = sbr.rel (0) target = $region17
    $region16: #{gcn_forward.1} parent=1 // pred_region
      _
    $region17: #{gcn_forward.1} parent=1 // pred_fallthru
      _
    // Predicated region
    $region18: #{gcn_forward.1} parent=1 // pred_check
      _
    $region19: #{gcn_forward.1} parent=1 // pred_check_branch
      %20 = sbr.rel (0) target = $region21
    $region20: #{gcn_forward.1} parent=1 // pred_region
      _
    $region21: #{gcn_forward.1} parent=1 // pred_fallthru
      _
    %v22 = vld [vmem:[%s0] sm:$0xf]
    %v23 = vld [vmem:[%s0 + $0x4] sm:$0xf]
    %v24 = vld [vmem:[%s0 + $0x8] sm:$0xf]
    %v25 = vld [vmem:[%s0 + $0xc] sm:$0xf]
    %v26 = vld [vmem:[%s1] sm:$0xf]
    %v27 = vld [vmem:[%s2] sm:$0x1]
    %v28 = vunpack.c.l.bf16 %v27
    %v29 = vlaneseq
    %v30 = vshrl.u32 %v29, 7
    %v31 = vsub.s32 0, %v30
    %v32 = vrot.slane %v28, %v31
    %v37 = vunpack.c.l.b16 %v22
    %v38 = vunpack.c.l.b16 %v23
    %v39 = vunpack.c.l.b16 %v24
    %v40 = vunpack.c.l.b16 %v25
    %v41 = vpack.c.b16 %v38, %v37
    %v42 = vpack.c.b16 %v40, %v39
    %vm43 = vcmask 64512
    %v45 = vsel %vm43, %v41, 0
    %v48 = vsel %vm43, %v42, 0
    %vm50 = vcmask 1043456
    %v52 = vsel %vm50, %v26, 0
    %54 = vmatprep.subr.bf16.mxu0 0
    %55 = vmatpush1.bf16.msra.mxu0 %v52
    %56 = vmatprep.subr.bf16.mxu0 0
    %57 = vmatpush1.bf16.msra.mxu0 0
    %58 = vmatprep.subr.bf16.mxu0 0
    %59 = vmatpush1.bf16.msra.mxu0 0
    %60 = vmatprep.subr.bf16.mxu0 0
    %61 = vmatpush1.bf16.msra.mxu0 0
    %62 = vmatprep.subr.bf16.mxu0 0
    %63 = vmatpush1.bf16.msra.mxu0 0
    %64 = vmatprep.subr.bf16.mxu0 0
    %65 = vmatpush1.bf16.msra.mxu0 0
    %66 = vmatprep.subr.bf16.mxu0 0
    %67 = vmatpush1.bf16.msra.mxu0 0
    %68 = vmatprep.subr.bf16.mxu0 0
    %69 = vmatpush1.bf16.msra.mxu0 0
    %70 = vmatprep.subr.bf16.mxu0 0
    %71 = vmatpush1.bf16.msra.mxu0 0
    %72 = vmatprep.subr.bf16.mxu0 0
    %73 = vmatpush1.bf16.msra.mxu0 0
    %74 = vmatprep.subr.bf16.mxu0 0
    %75 = vmatpush1.bf16.msra.mxu0 0
    %76 = vmatprep.subr.bf16.mxu0 0
    %77 = vmatpush1.bf16.msra.mxu0 0
    %78 = vmatprep.subr.bf16.mxu0 0
    %79 = vmatpush1.bf16.msra.mxu0 0
    %80 = vmatprep.subr.bf16.mxu0 0
    %81 = vmatpush1.bf16.msra.mxu0 0
    %82 = vmatprep.subr.bf16.mxu0 0
    %83 = vmatpush1.bf16.msra.mxu0 0
    %84 = vmatprep.subr.bf16.mxu0 0
    %85 = vmatpush1.bf16.msra.mxu0 0
    %86 = vmatprep.mubr.bf16.mxu0 0
    %87 = vmatmul.mubr.bf16.gmra.mrb[0].mxu0 %v45
    %v88 = vpop.f32.mrb[0].mxu0
    %v89 = vadd.f32 %v32, %v88
    %v90 = vpop.f32.mrb[0].mxu0
    %v91 = vpop.f32.mrb[0].mxu0
    %v92 = vadd.f32 %v32, %v91
    %v93 = vpop.f32.mrb[0].mxu0
    %94 = vmatprep.mubr.bf16.mxu0 0
    %95 = vmatmul.mubr.bf16.gmra.mrb[0].mxu0 %v48
    %v96 = vpop.f32.mrb[0].mxu0
    %v97 = vadd.f32 %v32, %v96
    %v98 = vpop.f32.mrb[0].mxu0
    %v99 = vpop.f32.mrb[0].mxu0
    %v100 = vadd.f32 %v32, %v99
    %v101 = vpop.f32.mrb[0].mxu0
    %102 = vdwg.mxu0
    %vm103 = vcmp.gt.f32.partialorder %v89, 0.0
    %vm104 = vcmp.gt.f32.partialorder %v92, 0.0
    %vm105 = vcmp.gt.f32.partialorder %v97, 0.0
    %vm106 = vcmp.gt.f32.partialorder %v100, 0.0
    %v107 = vmul.f32 %v89, 0.2
    %v108 = vmul.f32 %v92, 0.2
    %v109 = vmul.f32 %v97, 0.2
    %v110 = vmul.f32 %v100, 0.2
    %v111 = vsel %vm103, %v89, %v107
    %v112 = vsel %vm104, %v92, %v108
    %v113 = vsel %vm105, %v97, %v109
    %v114 = vsel %vm106, %v100, %v110
    %v115 = vpack.c.bf16 %v112, %v111
    %v116 = vpack.c.bf16 %v114, %v113
    %v117 = vld [vmem:[%s3] sm:$0xf]
    %v118 = vld [vmem:[%s3 + $0x4] sm:$0xf]
    %v119 = vld [vmem:[%s3 + $0x8] sm:$0xf]
    %v120 = vld [vmem:[%s3 + $0xc] sm:$0xf]
    %v121 = vld [vmem:[%s4] sm:$0x1]
    %v122 = vunpack.c.l.bf16 %v121
    %v123 = vlaneseq
    %v124 = vshrl.u32 %v123, 7
    %v125 = vsub.s32 0, %v124
    %v126 = vrot.slane %v122, %v125
    %v131 = vunpack.c.l.b16 %v117
    %v132 = vunpack.c.l.b16 %v118
    %v133 = vunpack.c.l.b16 %v119
    %v134 = vunpack.c.l.b16 %v120
    %v135 = vpack.c.b16 %v132, %v131
    %v136 = vpack.c.b16 %v134, %v133
    %vm139 = vcmask 261120
    %v141 = vsel %vm139, %v115, 0
    %v144 = vsel %vm139, %v116, 0
    %146 = vmatprep.subr.bf16.mxu0 0
    %147 = vmatpush1.bf16.msra.mxu0 %v135
    %148 = vmatprep.subr.bf16.mxu0 0
    %149 = vmatpush1.bf16.msra.mxu0 %v136
    %150 = vmatprep.subr.bf16.mxu0 0
    %151 = vmatpush1.bf16.msra.mxu0 0
    %152 = vmatprep.subr.bf16.mxu0 0
    %153 = vmatpush1.bf16.msra.mxu0 0
    %154 = vmatprep.subr.bf16.mxu0 0
    %155 = vmatpush1.bf16.msra.mxu0 0
    %156 = vmatprep.subr.bf16.mxu0 0
    %157 = vmatpush1.bf16.msra.mxu0 0
    %158 = vmatprep.subr.bf16.mxu0 0
    %159 = vmatpush1.bf16.msra.mxu0 0
    %160 = vmatprep.subr.bf16.mxu0 0
    %161 = vmatpush1.bf16.msra.mxu0 0
    %162 = vmatprep.subr.bf16.mxu0 0
    %163 = vmatpush1.bf16.msra.mxu0 0
    %164 = vmatprep.subr.bf16.mxu0 0
    %165 = vmatpush1.bf16.msra.mxu0 0
    %166 = vmatprep.subr.bf16.mxu0 0
    %167 = vmatpush1.bf16.msra.mxu0 0
    %168 = vmatprep.subr.bf16.mxu0 0
    %169 = vmatpush1.bf16.msra.mxu0 0
    %170 = vmatprep.subr.bf16.mxu0 0
    %171 = vmatpush1.bf16.msra.mxu0 0
    %172 = vmatprep.subr.bf16.mxu0 0
    %173 = vmatpush1.bf16.msra.mxu0 0
    %174 = vmatprep.subr.bf16.mxu0 0
    %175 = vmatpush1.bf16.msra.mxu0 0
    %176 = vmatprep.subr.bf16.mxu0 0
    %177 = vmatpush1.bf16.msra.mxu0 0
    %178 = vmatprep.mubr.bf16.mxu0 0
    %179 = vmatmul.mubr.bf16.gmra.mrb[0].mxu0 %v141
    %v180 = vpop.f32.mrb[0].mxu0
    %v181 = vadd.f32 %v126, %v180
    %v182 = vpop.f32.mrb[0].mxu0
    %v183 = vpop.f32.mrb[0].mxu0
    %v184 = vadd.f32 %v126, %v183
    %v185 = vpop.f32.mrb[0].mxu0
    %186 = vmatprep.mubr.bf16.mxu0 0
    %187 = vmatmul.mubr.bf16.gmra.mrb[0].mxu0 %v144
    %v188 = vpop.f32.mrb[0].mxu0
    %v189 = vadd.f32 %v126, %v188
    %v190 = vpop.f32.mrb[0].mxu0
    %v191 = vpop.f32.mrb[0].mxu0
    %v192 = vadd.f32 %v126, %v191
    %v193 = vpop.f32.mrb[0].mxu0
    %194 = vdwg.mxu0
    %vm195 = vcmp.gt.f32.partialorder %v181, 0.0
    %vm196 = vcmp.gt.f32.partialorder %v184, 0.0
    %vm197 = vcmp.gt.f32.partialorder %v189, 0.0
    %vm198 = vcmp.gt.f32.partialorder %v192, 0.0
    %v199 = vmul.f32 %v181, 0.2
    %v200 = vmul.f32 %v184, 0.2
    %v201 = vmul.f32 %v189, 0.2
    %v202 = vmul.f32 %v192, 0.2
    %v203 = vsel %vm195, %v181, %v199
    %v204 = vsel %vm196, %v184, %v200
    %v205 = vsel %vm197, %v189, %v201
    %v206 = vsel %vm198, %v192, %v202
    %v207 = vpack.c.bf16 %v204, %v203
    %v208 = vpack.c.bf16 %v206, %v205
    %v211 = vunpack.c.l.b16 %v207
    %v212 = vunpack.c.h.b16 %v207
    %v213 = vunpack.c.l.b16 %v208
    %v214 = vunpack.c.h.b16 %v208
    %v215 = vpack.c.b16 %v211, %v211
    %v216 = vpack.c.b16 %v212, %v212
    %v217 = vpack.c.b16 %v213, %v213
    %v218 = vpack.c.b16 %v214, %v214
    %vm223 = vcmask 257024
    %224 = vst.msk [vmem:[#allocation2] sm:$0xf] %vm223, %v215
    %225 = vst.msk [vmem:[#allocation2 + $0x4] sm:$0xf] %vm223, %v216
    %226 = vst.msk [vmem:[#allocation2 + $0x8] sm:$0xf] %vm223, %v217
    %227 = vst.msk [vmem:[#allocation2 + $0xc] sm:$0xf] %vm223, %v218
    // Predicated region
    $region22: #{gcn_forward.1} parent=1 // pred_check
      _
    $region23: #{gcn_forward.1} parent=1 // pred_check_branch
      %229 = sbr.rel (0) target = $region25
    $region24: #{gcn_forward.1} parent=1 // pred_region
      %s231 = ssub.s32 256, 256
      %232 = vsyncadd [#allocation3], %s231
      %s233 = sshll.u32 [#allocation2], 4
      %s234 = int_to_ptr.vmem [resolvable:$true] %s233
      %239 = dma.vmem_to_hbm [thread:$0]  %s234, 256, %s5, [#allocation3], 64, 64, 4
    $region25: #{gcn_forward.1} parent=1 // pred_fallthru
      _
    // Predicated region
    $region26: #{gcn_forward.1} parent=1 // pred_check
      _
    $region27: #{gcn_forward.1} parent=1 // pred_check_branch
      %241 = sbr.rel (0) target = $region29
    $region28: #{gcn_forward.1} parent=1 // pred_region
      %242 = dma.done [#allocation3], 256
    $region29: #{gcn_forward.1} parent=1 // pred_fallthru
      _
    %243 = vsyncpa [#allocation3], 1

</llo_original>
